<compile_context>
chip_gen: v6e
topology: v6e:2x2x1
jax: 0.10.0
libtpu: 0.0.40
codegen_flags: <defaults>
</compile_context>

<pallas_src>
import math

import jax
import jax.numpy as jnp
from jax import lax
from jax.experimental import pallas as pl
from jax.experimental.pallas import tpu as pltpu


def head_kernel(x_ref, wqkv_ref, o_ref):
    # x_ref: (Bb, T, C) tile; wqkv_ref: (C, 3*hs) resident; o_ref: (Bb, T, hs).
    Bb, T, C = x_ref.shape
    hs = o_ref.shape[-1]
    scale = 1.0 / math.sqrt(C)   # NOTE: module scales by C**-0.5 (C = n_embd).

    # ---- Fused QKV projection (one MXU matmul, M = Bb*T, N = 3*hs) ----------
    x2d = x_ref[...].reshape(Bb * T, C).astype(jnp.bfloat16)
    qkv = jnp.dot(x2d, wqkv_ref[...],
                  preferred_element_type=jnp.float32)            # (Bb*T, 3*hs) f32
    qkv = qkv.reshape(Bb, T, 3 * hs)
    q = qkv[:, :, 0 * hs:1 * hs] * scale                          # scale q, not scores
    k = qkv[:, :, 1 * hs:2 * hs]
    v = qkv[:, :, 2 * hs:3 * hs]

    # ---- Scores: batched q @ k^T without an explicit transpose --------------
    s = jnp.einsum('btd,bsd->bts',
                   q.astype(jnp.bfloat16), k.astype(jnp.bfloat16),
                   preferred_element_type=jnp.float32)            # (Bb, T, T) f32

    # ---- Causal mask (tril[:T, :T]) ------------------------------------------
    row = lax.broadcasted_iota(jnp.int32, (T, T), 0)
    col = lax.broadcasted_iota(jnp.int32, (T, T), 1)
    s = jnp.where((col <= row)[None, :, :], s, -jnp.inf)

    # ---- Softmax (f32 element-wise math), normalization deferred -------------
    m = jnp.max(s, axis=-1, keepdims=True)
    e = jnp.exp(s - m)                                            # (Bb, T, T) f32
    denom = jnp.sum(e, axis=-1, keepdims=True)                    # (Bb, T, 1)  f32

    # Dropout: eval-mode identity.

    # ---- out = (e @ v) / denom  (bf16 MXU operands, EUP reciprocal) ----------
    out = jnp.einsum('bts,bsd->btd',
                     e.astype(jnp.bfloat16), v.astype(jnp.bfloat16),
                     preferred_element_type=jnp.float32)          # (Bb, T, hs) f32
    out = out * pl.reciprocal(denom, approx=True)
    o_ref[...] = out.astype(o_ref.dtype)


def _pick_block_b(B):
    """Largest divisor of B that is <= 8 and still leaves >= 2 grid steps."""
    for bb in range(min(8, B), 0, -1):
        if B % bb == 0 and (B < 2 or B // bb >= 2):
            return bb
    return 1


def head_forward(x, wk, wq, wv):
    """x: [B, T, C]; wk/wq/wv: [C, head_size] (pre-transposed Linear weights)."""
    B, T, C = x.shape
    hs = wk.shape[1]
    Bb = _pick_block_b(B)
    n_steps = B // Bb

    # Fuse the three projections into one (C, 3*hs) weight, bf16 MXU operand.
    wqkv = jnp.concatenate([wq, wk, wv], axis=1).astype(jnp.bfloat16)

    flops = B * T * (2 * C * 3 * hs) + 2 * B * (2 * T * T * hs)
    bytes_accessed = (B * T * C * x.dtype.itemsize
                      + wqkv.size * wqkv.dtype.itemsize
                      + B * T * hs * x.dtype.itemsize)

    return pl.pallas_call(
        head_kernel,
        out_shape=jax.ShapeDtypeStruct((B, T, hs), x.dtype),
        grid_spec=pltpu.PrefetchScalarGridSpec(
            num_scalar_prefetch=0,
            grid=(n_steps,),                                       # >=2 steps -> megacore on v7x
            in_specs=[
                pl.BlockSpec((Bb, T, C), lambda b: (b, 0, 0)),     # Bb batch elems per step
                pl.BlockSpec((C, 3 * hs), lambda b: (0, 0)),       # fused Wqkv (resident)
            ],
            out_specs=pl.BlockSpec((Bb, T, hs), lambda b: (b, 0, 0)),
        ),
        compiler_params=pltpu.CompilerParams(
            dimension_semantics=("parallel",)),
        cost_estimate=pl.CostEstimate(
            flops=flops,
            transcendentals=B * T * T + B * T,
            bytes_accessed=bytes_accessed),
    )(x, wqkv)


def ref_head(x, wk, wq, wv):
    B, T, C = x.shape
    k = x @ wk
    q = x @ wq
    v = x @ wv
    wei = (q @ jnp.swapaxes(k, -2, -1)) * (C ** -0.5)
    mask = jnp.tril(jnp.ones((T, T), dtype=bool))
    wei = jnp.where(mask[None, :, :], wei, -jnp.inf)
    wei = jax.nn.softmax(wei, axis=-1)
    return wei @ v


if __name__ == "__main__":
    n_embd = 384            # as in the PyTorch module
    head_size = 64          # n_embd / n_head for the reference GPT (6 heads)
    B, T = 4, 8             # small token batch, T <= block_size = 256

    key = jax.random.PRNGKey(0)
    kx, kk, kq, kv = jax.random.split(key, 4)

    x = jax.random.normal(kx, (B, T, n_embd), dtype=jnp.float32)

    # Deterministic parameter init (PyTorch Linear-style uniform bounds),
    # stored pre-transposed as [in, out] so the kernel does x @ W directly.
    bound = 1.0 / math.sqrt(n_embd)
    wk = jax.random.uniform(kk, (n_embd, head_size), jnp.float32, -bound, bound)
    wq = jax.random.uniform(kq, (n_embd, head_size), jnp.float32, -bound, bound)
    wv = jax.random.uniform(kv, (n_embd, head_size), jnp.float32, -bound, bound)

    out = head_forward(x, wk, wq, wv)
    out = jax.block_until_ready(out)

    ref = ref_head(x, wk, wq, wv)
    assert out.shape == (B, T, head_size)
    # bf16 MXU operands + approx reciprocal -> small drift vs the f32 reference.
    assert jnp.allclose(out, ref, atol=3e-2, rtol=3e-2), (
        float(jnp.max(jnp.abs(out - ref))))

    print("KERNEL_OK")
</pallas_src>

<mosaic_0001>
module attributes {stable_mosaic.version = 11 : i64} {
  func.func @head_kernel(%arg0: i32, %arg1: memref<2x8x384xf32, #tpu.memory_space<vmem>>, %arg2: memref<384x192xbf16, #tpu.memory_space<vmem>>, %arg3: memref<2x8x64xf32, #tpu.memory_space<vmem>>) attributes {dimension_semantics = [#tpu.dimension_semantics<parallel>], iteration_bounds = array<i64: 2>, scalar_prefetch = 0 : i64, scratch_operands = 0 : i64, tpu.core_type = #tpu.core_type<tc>, window_params = [{transform_indices = @transform_0, window_bounds = array<i64: 2, 8, 384>}, {pipeline_mode = #tpu.pipeline_mode<synchronous>, transform_indices = @transform_1, window_bounds = array<i64: 384, 192>}, {transform_indices = @transform_2, window_bounds = array<i64: 2, 8, 64>}]} {
    %c0 = arith.constant 0 : index
    %c0_0 = arith.constant 0 : index
    %c0_1 = arith.constant 0 : index
    %0 = vector.load %arg1[%c0, %c0_0, %c0_1] : memref<2x8x384xf32, #tpu.memory_space<vmem>>, vector<2x8x384xf32>
    %1 = vector.shape_cast %0 : vector<2x8x384xf32> to vector<16x384xf32>
    %2 = arith.truncf %1 : vector<16x384xf32> to vector<16x384xbf16>
    %c0_2 = arith.constant 0 : index
    %c0_3 = arith.constant 0 : index
    %3 = vector.load %arg2[%c0_2, %c0_3] : memref<384x192xbf16, #tpu.memory_space<vmem>>, vector<384x192xbf16>
    %cst = arith.constant dense<0.000000e+00> : vector<16x192xf32>
    %4 = tpu.matmul %2, %3, %cst {dimension_numbers = #tpu.dot_dimension_numbers<[1], [0], [0], [1], [0, 0, 1, 1], [], []>} : vector<16x384xbf16>, vector<384x192xbf16>, vector<16x192xf32> -> vector<16x192xf32>
    %5 = vector.shape_cast %4 : vector<16x192xf32> to vector<2x8x192xf32>
    %6 = vector.extract_strided_slice %5 {offsets = [0, 0, 0], sizes = [2, 8, 64], strides = [1, 1, 1]} : vector<2x8x192xf32> to vector<2x8x64xf32>
    %cst_4 = arith.constant 0.0510310382 : f32
    %7 = vector.broadcast %cst_4 : f32 to vector<2x8x64xf32>
    %8 = arith.mulf %6, %7 : vector<2x8x64xf32>
    %9 = vector.extract_strided_slice %5 {offsets = [0, 0, 64], sizes = [2, 8, 64], strides = [1, 1, 1]} : vector<2x8x192xf32> to vector<2x8x64xf32>
    %10 = vector.extract_strided_slice %5 {offsets = [0, 0, 128], sizes = [2, 8, 64], strides = [1, 1, 1]} : vector<2x8x192xf32> to vector<2x8x64xf32>
    %11 = arith.truncf %8 : vector<2x8x64xf32> to vector<2x8x64xbf16>
    %12 = arith.truncf %9 : vector<2x8x64xf32> to vector<2x8x64xbf16>
    "tpu.trace_start"() <{level = 10 : i32, message = "btd,bsd->bts"}> : () -> ()
    %cst_5 = arith.constant dense<0.000000e+00> : vector<2x8x8xf32>
    %13 = tpu.matmul %11, %12, %cst_5 {dimension_numbers = #tpu.dot_dimension_numbers<[2], [2], [1], [1], [0, 0, 0, 1, 1, 1], [0], [0]>} : vector<2x8x64xbf16>, vector<2x8x64xbf16>, vector<2x8x8xf32> -> vector<2x8x8xf32>
    "tpu.trace_stop"() : () -> ()
    %14 = tpu.iota {dimensions = array<i32: 0>} : vector<8x8xi32>
    %15 = tpu.iota {dimensions = array<i32: 1>} : vector<8x8xi32>
    %16 = arith.cmpi sle, %15, %14 : vector<8x8xi32>
    %17 = vector.shape_cast %16 : vector<8x8xi1> to vector<1x8x8xi1>
    %cst_6 = arith.constant 0xFF800000 : f32
    %18 = vector.shape_cast %17 : vector<1x8x8xi1> to vector<1x8x8xi1>
    %19 = vector.broadcast %18 : vector<1x8x8xi1> to vector<2x8x8xi1>
    %20 = vector.broadcast %cst_6 : f32 to vector<2x8x8xf32>
    %21 = arith.select %19, %13, %20 : vector<2x8x8xi1>, vector<2x8x8xf32>
    %cst_7 = arith.constant dense<0xFF800000> : vector<2x8xf32>
    %22 = vector.multi_reduction <maximumf>, %21, %cst_7 [2] : vector<2x8x8xf32> to vector<2x8xf32>
    %23 = vector.shape_cast %22 : vector<2x8xf32> to vector<2x8x1xf32>
    %24 = vector.broadcast %23 : vector<2x8x1xf32> to vector<2x8x8xf32>
    %25 = arith.subf %21, %24 : vector<2x8x8xf32>
    %26 = math.exp %25 : vector<2x8x8xf32>
    %cst_8 = arith.constant dense<0.000000e+00> : vector<2x8xf32>
    %27 = vector.multi_reduction <add>, %26, %cst_8 [2] : vector<2x8x8xf32> to vector<2x8xf32>
    %28 = vector.shape_cast %27 : vector<2x8xf32> to vector<2x8x1xf32>
    %29 = arith.truncf %26 : vector<2x8x8xf32> to vector<2x8x8xbf16>
    %30 = arith.truncf %10 : vector<2x8x64xf32> to vector<2x8x64xbf16>
    "tpu.trace_start"() <{level = 10 : i32, message = "bts,bsd->btd"}> : () -> ()
    %cst_9 = arith.constant dense<0.000000e+00> : vector<2x8x64xf32>
    %31 = tpu.matmul %29, %30, %cst_9 {dimension_numbers = #tpu.dot_dimension_numbers<[2], [1], [1], [2], [0, 0, 0, 1, 1, 2], [0], [0]>} : vector<2x8x8xbf16>, vector<2x8x64xbf16>, vector<2x8x64xf32> -> vector<2x8x64xf32>
    "tpu.trace_stop"() : () -> ()
    %32 = tpu.reciprocal %28 {approx = true} : vector<2x8x1xf32> -> vector<2x8x1xf32>
    %33 = vector.broadcast %32 : vector<2x8x1xf32> to vector<2x8x64xf32>
    %34 = arith.mulf %31, %33 : vector<2x8x64xf32>
    %c0_10 = arith.constant 0 : index
    %c0_11 = arith.constant 0 : index
    %c0_12 = arith.constant 0 : index
    %35 = vector.load %arg3[%c0_10, %c0_11, %c0_12] : memref<2x8x64xf32, #tpu.memory_space<vmem>>, vector<2x8x64xf32>
    tpu.vector_store %arg3[%c0_10, %c0_11, %c0_12], %34 {strides = array<i32>} : memref<2x8x64xf32, #tpu.memory_space<vmem>>, vector<2x8x64xf32>,
    return
  }
  func.func @transform_0(%arg0: i32) -> (i32, i32, i32) {
    %c0_i32 = arith.constant 0 : i32
    %c0_i32_0 = arith.constant 0 : i32
    %c0_i32_1 = arith.constant 0 : i32
    return %arg0, %c0_i32, %c0_i32_0 : i32, i32, i32
  }
  func.func @transform_1(%arg0: i32) -> (i32, i32) {
    %c0_i32 = arith.constant 0 : i32
    %c0_i32_0 = arith.constant 0 : i32
    %c0_i32_1 = arith.constant 0 : i32
    return %c0_i32, %c0_i32_0 : i32, i32
  }
  func.func @transform_2(%arg0: i32) -> (i32, i32, i32) {
    %c0_i32 = arith.constant 0 : i32
    %c0_i32_0 = arith.constant 0 : i32
    %c0_i32_1 = arith.constant 0 : i32
    return %arg0, %c0_i32, %c0_i32_0 : i32, i32, i32
  }
}

</mosaic_0001>

<llo_original>
// kernel: tpu_custom_call.1
$region0: #{tpu_custom_call.1}
  #allocation0 [shape = 'u32[]', space=smem, size = 0x4, offset = 0x4, fixed_abs, tag = 'smem constant byte address 0x4 - core index']
  #allocation1 [shape = 'u32[144,128]{1,0:T(1,128)}', space=vmem, size = 0x12000, scoped, tag = 'internal scratch']
  %s0 = inlined_call_operand.vmem [shape: f32[4,8,384], index: 0, kind: input, shape index: {}]
  %s1 = inlined_call_operand.vmem [shape: bf16[384,192], index: 1, kind: input, shape index: {}]
  %s2 = inlined_call_operand.hbm [shape: f32[4,8,64], index: 2, kind: output, shape index: {}]
  %s3 = sld [smem:[#allocation0]]
  $region41: #{tpu_custom_call.1} parent=0
    _
  %s5 = ssub.s32 1, %s3
  %s6 = scalar_select 0, %s5, %s3
  $region1: #{tpu_custom_call.1} parent=0
    #allocation2 [shape = 'u8[16384]{0}', space=vmem, size = 0x4000, scoped, tag = 'output window, operand 0']
    #allocation3 [shape = 's32[2]{0}', space=sflag, size = 0x8, scoped, tag = 'scoped memory for tpu_custom_call.1']
    %7 = vsyncpa [#allocation3], 0
    %s8 = scalar_lea.sflag [#allocation3], 1
    %9 = vsyncpa %s8, 0
    loop: start=0, step=1, limit=4
    $region2: #{tpu_custom_call.1} parent=1 // loop_pre_header
      _
    $region3: #{tpu_custom_call.1} parent=1 // loop_header
      %s11 = sphi 0, %s15
      %p12 = scmp.ge.s32.totalorder %s11, 4
      %s21 = sphi 0, %s23
      %s24 = sphi 0, %s21
      %s25 = sphi 0, %s24
      %s41 = sphi 0, %s25
      %s45 = sphi 0, %s45
      %s47 = sphi 0, %s45
      %s48 = sphi 0, %s47
      %s62 = sphi 0, %s48
      %s68 = sphi 0, %s70
      %s71 = sphi 0, %s68
      %s72 = sphi 0, %s71
      %s88 = sphi 0, %s72
    $region4: #{tpu_custom_call.1} parent=1 // loop_header_branch
      %14 = sbr.rel (%p12) target = $region8
    $region5: #{tpu_custom_call.1} parent=1 // loop_body
      %s16 = ssub.s32 %s11, 1
      %s17 = ssub.s32 %s11, 2
      %s18 = sadd.s32 %s11, 1
      %s19 = ssub.s32 %s11, %s18
      %p20 = scmp.eq.s32.totalorder %s19, 0
      %s22 = sadd.s32 %s21, 1
      %s23 = scalar_select %p20, %s21, %s22
      %p26 = pneg %p20
      %p27 = scmp.eq.s32.totalorder %s11, 1
      %p28 = por %p26, %p27
      %p29 = scmp.ne.s32.totalorder %s21, %s24
      %p30 = scmp.eq.s32.totalorder %s11, 0
      %p31 = por %p29, %p30
      %p32 = scmp.ne.s32.totalorder %s21, %s24
      %p33 = scmp.eq.s32.totalorder %s16, 1
      %p34 = por %p32, %p33
      %p35 = scmp.ne.s32.totalorder %s24, %s25
      %p36 = scmp.eq.s32.totalorder %s16, 0
      %p37 = por %p35, %p36
      %p38 = scmp.ne.s32.totalorder %s24, %s25
      %p39 = scmp.eq.s32.totalorder %s17, 1
      %p40 = por %p38, %p39
      %p42 = scmp.ne.s32.totalorder %s25, %s41
      %p43 = scmp.eq.s32.totalorder %s17, 0
      %p44 = por %p42, %p43
      %s46 = sadd.s32 %s45, 1
      %p49 = scmp.eq.s32.totalorder %s11, 1
      %p50 = scmp.ne.s32.totalorder %s45, %s47
      %p51 = scmp.eq.s32.totalorder %s11, 0
      %p52 = por %p50, %p51
      %p53 = scmp.ne.s32.totalorder %s45, %s47
      %p54 = scmp.eq.s32.totalorder %s16, 1
      %p55 = por %p53, %p54
      %p56 = scmp.ne.s32.totalorder %s47, %s48
      %p57 = scmp.eq.s32.totalorder %s16, 0
      %p58 = por %p56, %p57
      %p59 = scmp.ne.s32.totalorder %s47, %s48
      %p60 = scmp.eq.s32.totalorder %s17, 1
      %p61 = por %p59, %p60
      %p63 = scmp.ne.s32.totalorder %s48, %s62
      %p64 = scmp.eq.s32.totalorder %s17, 0
      %p65 = por %p63, %p64
      %s66 = ssub.s32 %s11, %s18
      %p67 = scmp.eq.s32.totalorder %s66, 0
      %s69 = sadd.s32 %s68, 1
      %s70 = scalar_select %p67, %s68, %s69
      %p73 = pneg %p67
      %p74 = scmp.eq.s32.totalorder %s11, 1
      %p75 = por %p73, %p74
      %p76 = scmp.ne.s32.totalorder %s68, %s71
      %p77 = scmp.eq.s32.totalorder %s11, 0
      %p78 = por %p76, %p77
      %p79 = scmp.ne.s32.totalorder %s68, %s71
      %p80 = scmp.eq.s32.totalorder %s16, 1
      %p81 = por %p79, %p80
      %p82 = scmp.ne.s32.totalorder %s71, %s72
      %p83 = scmp.eq.s32.totalorder %s16, 0
      %p84 = por %p82, %p83
      %p85 = scmp.ne.s32.totalorder %s71, %s72
      %p86 = scmp.eq.s32.totalorder %s17, 1
      %p87 = por %p85, %p86
      %p89 = scmp.ne.s32.totalorder %s72, %s88
      %p90 = scmp.eq.s32.totalorder %s17, 0
      %p91 = por %p89, %p90
      %p92 = scmp.le.s32.totalorder 1, %s11
      %p93 = scmp.lt.s32.totalorder %s11, 3
      %p94 = pnand %p92, %p93
      %p95 = pneg %p94
      // Predicated region
      $region9: #{tpu_custom_call.1} parent=5 // pred_check
        _
      $region10: #{tpu_custom_call.1} parent=5 // pred_check_branch
        %97 = sbr.rel (%p94) target = $region12
      $region11: #{tpu_custom_call.1} parent=5 // pred_region
        %s98 = ssub.s32 %s11, 1
        // Predicated region
        $region13: #{tpu_custom_call.1} parent=11 // pred_check
          %p99 = pneg %p58
        $region14: #{tpu_custom_call.1} parent=11 // pred_check_branch
          %101 = sbr.rel (%p99) target = $region16
        $region15: #{tpu_custom_call.1} parent=11 // pred_region
          _
        $region16: #{tpu_custom_call.1} parent=11 // pred_fallthru
          _
      $region12: #{tpu_custom_call.1} parent=5 // pred_fallthru
        _
      %p102 = scmp.lt.s32.totalorder %s11, 2
      // Predicated region
      $region17: #{tpu_custom_call.1} parent=5 // pred_check
        %p103 = pneg %p102
      $region18: #{tpu_custom_call.1} parent=5 // pred_check_branch
        %105 = sbr.rel (%p103) target = $region20
      $region19: #{tpu_custom_call.1} parent=5 // pred_region
        // Predicated region
        $region21: #{tpu_custom_call.1} parent=19 // pred_check
          %p106 = pneg %p31
        $region22: #{tpu_custom_call.1} parent=19 // pred_check_branch
          %108 = sbr.rel (%p106) target = $region24
        $region23: #{tpu_custom_call.1} parent=19 // pred_region
          %s109 = smul.u32 2, %s11
          %p110 = scmp.lt.s32.totalorder %s109, 3
          %s111 = scalar_select %p110, %s109, 3
          %s112 = smul.addr %s111, 3
          %s113 = smul.addr %s112, 8
          %s114 = scalar_lea.vmem %s0, %s113
          %s115 = smul.u32 2, %s11
        $region24: #{tpu_custom_call.1} parent=19 // pred_fallthru
          _
      $region20: #{tpu_custom_call.1} parent=5 // pred_fallthru
        _
      %p116 = scmp.le.s32.totalorder 1, %s11
      %p117 = scmp.lt.s32.totalorder %s11, 3
      %p118 = pnand %p116, %p117
      %p119 = pneg %p118
      // Predicated region
      $region25: #{tpu_custom_call.1} parent=5 // pred_check
        _
      $region26: #{tpu_custom_call.1} parent=5 // pred_check_branch
        %121 = sbr.rel (%p118) target = $region28
      $region27: #{tpu_custom_call.1} parent=5 // pred_region
        %s122 = ssub.s32 %s11, 1
        %s123 = smul.u32 2, %s16
        %p124 = scmp.lt.s32.totalorder %s123, 3
        %s125 = scalar_select %p124, %s123, 3
        %s126 = smul.addr %s125, 3
        %s127 = smul.addr %s126, 8
        %s128 = scalar_lea.vmem %s0, %s127
        %p129 = pneg %p37
        %p130 = pneg %p34
        %p131 = pneg %p58
        %p132 = pneg %p55
        %p133 = pneg %p84
        %p134 = pneg %p81
        %s135 = sand.u32 %s71, 1
        %s136 = scalar_lea.sflag [#allocation3], %s135
        %s137 = sand.u32 %s71, 1
        %s138 = smul.addr %s137, 16
        %s139 = scalar_lea.vmem [#allocation2], %s138
        %s140 = smul.u32 2, %s16
        %p141 = scmp.lt.s32.totalorder %s140, 3
        %s142 = scalar_select %p141, %s140, 3
        %s143 = smul.addr %s142, 3
        %s144 = smul.addr %s143, 8
        %s145 = scalar_lea.vmem %s0, %s144
        %s146 = smul.u32 2, %s16
        %s147 = smul.u32 2, %s16
        %v149 = vld [vmem:[%s145] sm:$0xff]
        %v150 = vld [vmem:[%s145 + $0x8] sm:$0xff]
        %v151 = vld [vmem:[%s145 + $0x10] sm:$0xff]
        %v152 = vld [vmem:[%s145 + $0x18] sm:$0xff]
        %v153 = vld [vmem:[%s145 + $0x20] sm:$0xff]
        %v154 = vld [vmem:[%s145 + $0x28] sm:$0xff]
        %v155 = vpack.c.bf16 %v152, %v149
        %v156 = vpack.c.bf16 %v153, %v150
        %v157 = vpack.c.bf16 %v154, %v151
        %v158 = vld [vmem:[%s1] sm:$0xff]
        %v159 = vld [vmem:[%s1 + $0x8] sm:$0xff]
        %v160 = vld [vmem:[%s1 + $0x10] sm:$0xff]
        %v161 = vld [vmem:[%s1 + $0x18] sm:$0xff]
        %v162 = vld [vmem:[%s1 + $0x20] sm:$0xff]
        %v163 = vld [vmem:[%s1 + $0x28] sm:$0xff]
        %v164 = vld [vmem:[%s1 + $0x30] sm:$0xff]
        %v165 = vld [vmem:[%s1 + $0x38] sm:$0xff]
        %v166 = vld [vmem:[%s1 + $0x40] sm:$0xff]
        %v167 = vld [vmem:[%s1 + $0x48] sm:$0xff]
        %v168 = vld [vmem:[%s1 + $0x50] sm:$0xff]
        %v169 = vld [vmem:[%s1 + $0x58] sm:$0xff]
        %v170 = vld [vmem:[%s1 + $0x60] sm:$0xff]
        %v171 = vld [vmem:[%s1 + $0x68] sm:$0xff]
        %v172 = vld [vmem:[%s1 + $0x70] sm:$0xff]
        %v173 = vld [vmem:[%s1 + $0x78] sm:$0xff]
        %v174 = vld [vmem:[%s1 + $0x80] sm:$0xff]
        %v175 = vld [vmem:[%s1 + $0x88] sm:$0xff]
        %v176 = vld [vmem:[%s1 + $0x90] sm:$0xff]
        %v177 = vld [vmem:[%s1 + $0x98] sm:$0xff]
        %v178 = vld [vmem:[%s1 + $0xa0] sm:$0xff]
        %v179 = vld [vmem:[%s1 + $0xa8] sm:$0xff]
        %v180 = vld [vmem:[%s1 + $0xb0] sm:$0xff]
        %v181 = vld [vmem:[%s1 + $0xb8] sm:$0xff]
        %v182 = vld [vmem:[%s1 + $0xc0] sm:$0xff]
        %v183 = vld [vmem:[%s1 + $0xc8] sm:$0xff]
        %v184 = vld [vmem:[%s1 + $0xd0] sm:$0xff]
        %v185 = vld [vmem:[%s1 + $0xd8] sm:$0xff]
        %v186 = vld [vmem:[%s1 + $0xe0] sm:$0xff]
        %v187 = vld [vmem:[%s1 + $0xe8] sm:$0xff]
        %v188 = vld [vmem:[%s1 + $0xf0] sm:$0xff]
        %v189 = vld [vmem:[%s1 + $0xf8] sm:$0xff]
        %v190 = vld [vmem:[%s1 + $0x100] sm:$0xff]
        %v191 = vld [vmem:[%s1 + $0x108] sm:$0xff]
        %v192 = vld [vmem:[%s1 + $0x110] sm:$0xff]
        %v193 = vld [vmem:[%s1 + $0x118] sm:$0xff]
        %v194 = vld [vmem:[%s1 + $0x120] sm:$0xff]
        %v195 = vld [vmem:[%s1 + $0x128] sm:$0xff]
        %v196 = vld [vmem:[%s1 + $0x130] sm:$0xff]
        %v197 = vld [vmem:[%s1 + $0x138] sm:$0xff]
        %v198 = vld [vmem:[%s1 + $0x140] sm:$0xff]
        %v199 = vld [vmem:[%s1 + $0x148] sm:$0xff]
        %v200 = vld [vmem:[%s1 + $0x150] sm:$0xff]
        %v201 = vld [vmem:[%s1 + $0x158] sm:$0xff]
        %v202 = vld [vmem:[%s1 + $0x160] sm:$0xff]
        %v203 = vld [vmem:[%s1 + $0x168] sm:$0xff]
        %v204 = vld [vmem:[%s1 + $0x170] sm:$0xff]
        %v205 = vld [vmem:[%s1 + $0x178] sm:$0xff]
        %v254 = vunpack.c.l.b16 %v158
        %v255 = vunpack.c.h.b16 %v158
        %v256 = vunpack.c.l.b16 %v159
        %v257 = vunpack.c.h.b16 %v159
        %v258 = vunpack.c.l.b16 %v160
        %v259 = vunpack.c.h.b16 %v160
        %v260 = vunpack.c.l.b16 %v161
        %v261 = vunpack.c.h.b16 %v161
        %v262 = vunpack.c.l.b16 %v162
        %v263 = vunpack.c.h.b16 %v162
        %v264 = vunpack.c.l.b16 %v163
        %v265 = vunpack.c.h.b16 %v163
        %v266 = vunpack.c.l.b16 %v164
        %v267 = vunpack.c.h.b16 %v164
        %v268 = vunpack.c.l.b16 %v165
        %v269 = vunpack.c.h.b16 %v165
        %v270 = vunpack.c.l.b16 %v166
        %v271 = vunpack.c.h.b16 %v166
        %v272 = vunpack.c.l.b16 %v167
        %v273 = vunpack.c.h.b16 %v167
        %v274 = vunpack.c.l.b16 %v168
        %v275 = vunpack.c.h.b16 %v168
        %v276 = vunpack.c.l.b16 %v169
        %v277 = vunpack.c.h.b16 %v169
        %v278 = vunpack.c.l.b16 %v170
        %v279 = vunpack.c.h.b16 %v170
        %v280 = vunpack.c.l.b16 %v171
        %v281 = vunpack.c.h.b16 %v171
        %v282 = vunpack.c.l.b16 %v172
        %v283 = vunpack.c.h.b16 %v172
        %v284 = vunpack.c.l.b16 %v173
        %v285 = vunpack.c.h.b16 %v173
        %v286 = vunpack.c.l.b16 %v174
        %v287 = vunpack.c.h.b16 %v174
        %v288 = vunpack.c.l.b16 %v175
        %v289 = vunpack.c.h.b16 %v175
        %v290 = vunpack.c.l.b16 %v176
        %v291 = vunpack.c.h.b16 %v176
        %v292 = vunpack.c.l.b16 %v177
        %v293 = vunpack.c.h.b16 %v177
        %v294 = vunpack.c.l.b16 %v178
        %v295 = vunpack.c.h.b16 %v178
        %v296 = vunpack.c.l.b16 %v179
        %v297 = vunpack.c.h.b16 %v179
        %v298 = vunpack.c.l.b16 %v180
        %v299 = vunpack.c.h.b16 %v180
        %v300 = vunpack.c.l.b16 %v181
        %v301 = vunpack.c.h.b16 %v181
        %v302 = vunpack.c.l.b16 %v182
        %v303 = vunpack.c.h.b16 %v182
        %v304 = vunpack.c.l.b16 %v183
        %v305 = vunpack.c.h.b16 %v183
        %v306 = vunpack.c.l.b16 %v184
        %v307 = vunpack.c.h.b16 %v184
        %v308 = vunpack.c.l.b16 %v185
        %v309 = vunpack.c.h.b16 %v185
        %v310 = vunpack.c.l.b16 %v186
        %v311 = vunpack.c.h.b16 %v186
        %v312 = vunpack.c.l.b16 %v187
        %v313 = vunpack.c.h.b16 %v187
        %v314 = vunpack.c.l.b16 %v188
        %v315 = vunpack.c.h.b16 %v188
        %v316 = vunpack.c.l.b16 %v189
        %v317 = vunpack.c.h.b16 %v189
        %v318 = vunpack.c.l.b16 %v190
        %v319 = vunpack.c.h.b16 %v190
        %v320 = vunpack.c.l.b16 %v191
        %v321 = vunpack.c.h.b16 %v191
        %v322 = vunpack.c.l.b16 %v192
        %v323 = vunpack.c.h.b16 %v192
        %v324 = vunpack.c.l.b16 %v193
        %v325 = vunpack.c.h.b16 %v193
        %v326 = vunpack.c.l.b16 %v194
        %v327 = vunpack.c.h.b16 %v194
        %v328 = vunpack.c.l.b16 %v195
        %v329 = vunpack.c.h.b16 %v195
        %v330 = vunpack.c.l.b16 %v196
        %v331 = vunpack.c.h.b16 %v196
        %v332 = vunpack.c.l.b16 %v197
        %v333 = vunpack.c.h.b16 %v197
        %v334 = vunpack.c.l.b16 %v198
        %v335 = vunpack.c.h.b16 %v198
        %v336 = vunpack.c.l.b16 %v199
        %v337 = vunpack.c.h.b16 %v199
        %v338 = vunpack.c.l.b16 %v200
        %v339 = vunpack.c.h.b16 %v200
        %v340 = vunpack.c.l.b16 %v201
        %v341 = vunpack.c.h.b16 %v201
        %v342 = vunpack.c.l.b16 %v202
        %v343 = vunpack.c.h.b16 %v202
        %v344 = vunpack.c.l.b16 %v203
        %v345 = vunpack.c.h.b16 %v203
        %v346 = vunpack.c.l.b16 %v204
        %v347 = vunpack.c.h.b16 %v204
        %v348 = vunpack.c.l.b16 %v205
        %v349 = vunpack.c.h.b16 %v205
        %v350 = vpack.c.b16 %v256, %v254
        %v351 = vpack.c.b16 %v257, %v255
        %v352 = vpack.c.b16 %v260, %v258
        %v353 = vpack.c.b16 %v261, %v259
        %v354 = vpack.c.b16 %v264, %v262
        %v355 = vpack.c.b16 %v265, %v263
        %v356 = vpack.c.b16 %v268, %v266
        %v357 = vpack.c.b16 %v269, %v267
        %v358 = vpack.c.b16 %v272, %v270
        %v359 = vpack.c.b16 %v273, %v271
        %v360 = vpack.c.b16 %v276, %v274
        %v361 = vpack.c.b16 %v277, %v275
        %v362 = vpack.c.b16 %v280, %v278
        %v363 = vpack.c.b16 %v281, %v279
        %v364 = vpack.c.b16 %v284, %v282
        %v365 = vpack.c.b16 %v285, %v283
        %v366 = vpack.c.b16 %v288, %v286
        %v367 = vpack.c.b16 %v289, %v287
        %v368 = vpack.c.b16 %v292, %v290
        %v369 = vpack.c.b16 %v293, %v291
        %v370 = vpack.c.b16 %v296, %v294
        %v371 = vpack.c.b16 %v297, %v295
        %v372 = vpack.c.b16 %v300, %v298
        %v373 = vpack.c.b16 %v301, %v299
        %v374 = vpack.c.b16 %v304, %v302
        %v375 = vpack.c.b16 %v305, %v303
        %v376 = vpack.c.b16 %v308, %v306
        %v377 = vpack.c.b16 %v309, %v307
        %v378 = vpack.c.b16 %v312, %v310
        %v379 = vpack.c.b16 %v313, %v311
        %v380 = vpack.c.b16 %v316, %v314
        %v381 = vpack.c.b16 %v317, %v315
        %v382 = vpack.c.b16 %v320, %v318
        %v383 = vpack.c.b16 %v321, %v319
        %v384 = vpack.c.b16 %v324, %v322
        %v385 = vpack.c.b16 %v325, %v323
        %v386 = vpack.c.b16 %v328, %v326
        %v387 = vpack.c.b16 %v329, %v327
        %v388 = vpack.c.b16 %v332, %v330
        %v389 = vpack.c.b16 %v333, %v331
        %v390 = vpack.c.b16 %v336, %v334
        %v391 = vpack.c.b16 %v337, %v335
        %v392 = vpack.c.b16 %v340, %v338
        %v393 = vpack.c.b16 %v341, %v339
        %v394 = vpack.c.b16 %v344, %v342
        %v395 = vpack.c.b16 %v345, %v343
        %v396 = vpack.c.b16 %v348, %v346
        %v397 = vpack.c.b16 %v349, %v347
        %446 = vmatprep.subr.bf16.mxu0 %v365
        %447 = vmatpush1.bf16.msra.mxu0 %v364
        %448 = vmatprep.subr.bf16.mxu0 %v363
        %449 = vmatpush1.bf16.msra.mxu0 %v362
        %450 = vmatprep.subr.bf16.mxu0 %v361
        %451 = vmatpush1.bf16.msra.mxu0 %v360
        %452 = vmatprep.subr.bf16.mxu0 %v359
        %453 = vmatpush1.bf16.msra.mxu0 %v358
        %454 = vmatprep.subr.bf16.mxu0 %v357
        %455 = vmatpush1.bf16.msra.mxu0 %v356
        %456 = vmatprep.subr.bf16.mxu0 %v355
        %457 = vmatpush1.bf16.msra.mxu0 %v354
        %458 = vmatprep.subr.bf16.mxu0 %v353
        %459 = vmatpush1.bf16.msra.mxu0 %v352
        %460 = vmatprep.subr.bf16.mxu0 %v351
        %461 = vmatpush1.bf16.msra.mxu0 %v350
        %462 = vmatprep.subr.bf16.mxu0 %v381
        %463 = vmatpush2.bf16.msra.mxu0 %v380
        %464 = vmatprep.subr.bf16.mxu0 %v379
        %465 = vmatpush2.bf16.msra.mxu0 %v378
        %466 = vmatprep.subr.bf16.mxu0 %v377
        %467 = vmatpush2.bf16.msra.mxu0 %v376
        %468 = vmatprep.subr.bf16.mxu0 %v375
        %469 = vmatpush2.bf16.msra.mxu0 %v374
        %470 = vmatprep.subr.bf16.mxu0 %v373
        %471 = vmatpush2.bf16.msra.mxu0 %v372
        %472 = vmatprep.subr.bf16.mxu0 %v371
        %473 = vmatpush2.bf16.msra.mxu0 %v370
        %474 = vmatprep.subr.bf16.mxu0 %v369
        %475 = vmatpush2.bf16.msra.mxu0 %v368
        %476 = vmatprep.subr.bf16.mxu0 %v367
        %477 = vmatpush2.bf16.msra.mxu0 %v366
        %478 = vmatprep.mubr.bf16.mxu0 %v156
        %479 = vmatmul.mubr.bf16.gmra.mxu0 %v155
        %v480 = vpop.f32.mrf.mxu0
        %v481 = vadd.f32 0.0, %v480
        %v482 = vpop.f32.mrf.mxu0
        %v483 = vadd.f32 0.0, %v482
        %v484 = vpop.f32.mrf.mxu0
        %v485 = vadd.f32 0.0, %v484
        %v486 = vpop.f32.mrf.mxu0
        %v487 = vadd.f32 0.0, %v486
        %488 = vdwg.mxu0
        %489 = vmatprep.subr.bf16.mxu0 %v397
        %490 = vmatpush1.bf16.msra.mxu0 %v396
        %491 = vmatprep.subr.bf16.mxu0 %v395
        %492 = vmatpush1.bf16.msra.mxu0 %v394
        %493 = vmatprep.subr.bf16.mxu0 %v393
        %494 = vmatpush1.bf16.msra.mxu0 %v392
        %495 = vmatprep.subr.bf16.mxu0 %v391
        %496 = vmatpush1.bf16.msra.mxu0 %v390
        %497 = vmatprep.subr.bf16.mxu0 %v389
        %498 = vmatpush1.bf16.msra.mxu0 %v388
        %499 = vmatprep.subr.bf16.mxu0 %v387
        %500 = vmatpush1.bf16.msra.mxu0 %v386
        %501 = vmatprep.subr.bf16.mxu0 %v385
        %502 = vmatpush1.bf16.msra.mxu0 %v384
        %503 = vmatprep.subr.bf16.mxu0 %v383
        %504 = vmatpush1.bf16.msra.mxu0 %v382
        %505 = vmatprep.subr.bf16.mxu0 0
        %506 = vmatpush2.bf16.msra.mxu0 0
        %507 = vmatprep.subr.bf16.mxu0 0
        %508 = vmatpush2.bf16.msra.mxu0 0
        %509 = vmatprep.subr.bf16.mxu0 0
        %510 = vmatpush2.bf16.msra.mxu0 0
        %511 = vmatprep.subr.bf16.mxu0 0
        %512 = vmatpush2.bf16.msra.mxu0 0
        %513 = vmatprep.subr.bf16.mxu0 0
        %514 = vmatpush2.bf16.msra.mxu0 0
        %515 = vmatprep.subr.bf16.mxu0 0
        %516 = vmatpush2.bf16.msra.mxu0 0
        %517 = vmatprep.subr.bf16.mxu0 0
        %518 = vmatpush2.bf16.msra.mxu0 0
        %519 = vmatprep.subr.bf16.mxu0 0
        %520 = vmatpush2.bf16.msra.mxu0 0
        %521 = vmatprep.mubr.bf16.mxu0 0
        %522 = vmatmul.mubr.bf16.gmra.mxu0 %v157
        %v523 = vpop.f32.mrf.mxu0
        %v524 = vadd.f32 %v481, %v523
        %v525 = vpop.f32.mrf.mxu0
        %v526 = vadd.f32 %v483, %v525
        %v527 = vpop.f32.mrf.mxu0
        %v528 = vadd.f32 %v485, %v527
        %v529 = vpop.f32.mrf.mxu0
        %v530 = vadd.f32 %v487, %v529
        %531 = vdwg.mxu0
        %v532 = vmul.f32 %v524, 0.05103104
        %v533 = vmul.f32 %v528, 0.05103104
        %v534 = vpack.c.bf16 %v532, %v532
        %v535 = vpack.c.bf16 %v533, %v533
        %v536 = vpack.c.bf16 %v524, %v524
        %v537 = vpack.c.bf16 %v528, %v528
        %539 = vrot.lane.b32.xlu0 %v536, 64
        %v540 = vpop.permute.xlu0 %539
        %vm541 = vcmask 523264
        %v543 = vsel %vm541, %v534, 0
        %v546 = vsel %vm541, %v540, 0
        %548 = vmatprep.subr.bf16.mxu0 0
        %549 = vmatpush1.bf16.xpose.msra.mxu0 0
        %550 = vmatprep.subr.bf16.mxu0 0
        %551 = vmatpush1.bf16.xpose.msra.mxu0 0
        %552 = vmatprep.subr.bf16.mxu0 0
        %553 = vmatpush1.bf16.xpose.msra.mxu0 0
        %554 = vmatprep.subr.bf16.mxu0 0
        %555 = vmatpush1.bf16.xpose.msra.mxu0 0
        %556 = vmatprep.subr.bf16.mxu0 0
        %557 = vmatpush1.bf16.xpose.msra.mxu0 0
        %558 = vmatprep.subr.bf16.mxu0 0
        %559 = vmatpush1.bf16.xpose.msra.mxu0 0
        %560 = vmatprep.subr.bf16.mxu0 0
        %561 = vmatpush1.bf16.xpose.msra.mxu0 0
        %562 = vmatprep.subr.bf16.mxu0 0
        %563 = vmatpush1.bf16.xpose.msra.mxu0 %v546
        %564 = vmatprep.subr.bf16.mxu0 0
        %565 = vmatpush2.bf16.xpose.msra.mxu0 0
        %566 = vmatprep.subr.bf16.mxu0 0
        %567 = vmatpush2.bf16.xpose.msra.mxu0 0
        %568 = vmatprep.subr.bf16.mxu0 0
        %569 = vmatpush2.bf16.xpose.msra.mxu0 0
        %570 = vmatprep.subr.bf16.mxu0 0
        %571 = vmatpush2.bf16.xpose.msra.mxu0 0
        %572 = vmatprep.subr.bf16.mxu0 0
        %573 = vmatpush2.bf16.xpose.msra.mxu0 0
        %574 = vmatprep.subr.bf16.mxu0 0
        %575 = vmatpush2.bf16.xpose.msra.mxu0 0
        %576 = vmatprep.subr.bf16.mxu0 0
        %577 = vmatpush2.bf16.xpose.msra.mxu0 0
        %578 = vmatprep.subr.bf16.mxu0 0
        %579 = vmatpush2.bf16.xpose.msra.mxu0 0
        %580 = vmatprep.mubr.bf16.mxu0 0
        %581 = vmatmul.mubr.bf16.gmra.mxu0 %v543
        %v582 = vpop.f32.mrf.mxu0
        %v583 = vadd.f32 0.0, %v582
        %v584 = vpop.f32.mrf.mxu0
        %v585 = vpop.f32.mrf.mxu0
        %v586 = vpop.f32.mrf.mxu0
        %587 = vdwg.mxu0
        %589 = vrot.lane.b32.xlu0 %v537, 64
        %v590 = vpop.permute.xlu0 %589
        %v592 = vsel %vm541, %v535, 0
        %v595 = vsel %vm541, %v590, 0
        %597 = vmatprep.subr.bf16.mxu0 0
        %598 = vmatpush1.bf16.xpose.msra.mxu0 0
        %599 = vmatprep.subr.bf16.mxu0 0
        %600 = vmatpush1.bf16.xpose.msra.mxu0 0
        %601 = vmatprep.subr.bf16.mxu0 0
        %602 = vmatpush1.bf16.xpose.msra.mxu0 0
        %603 = vmatprep.subr.bf16.mxu0 0
        %604 = vmatpush1.bf16.xpose.msra.mxu0 0
        %605 = vmatprep.subr.bf16.mxu0 0
        %606 = vmatpush1.bf16.xpose.msra.mxu0 0
        %607 = vmatprep.subr.bf16.mxu0 0
        %608 = vmatpush1.bf16.xpose.msra.mxu0 0
        %609 = vmatprep.subr.bf16.mxu0 0
        %610 = vmatpush1.bf16.xpose.msra.mxu0 0
        %611 = vmatprep.subr.bf16.mxu0 0
        %612 = vmatpush1.bf16.xpose.msra.mxu0 %v595
        %613 = vmatprep.subr.bf16.mxu0 0
        %614 = vmatpush2.bf16.xpose.msra.mxu0 0
        %615 = vmatprep.subr.bf16.mxu0 0
        %616 = vmatpush2.bf16.xpose.msra.mxu0 0
        %617 = vmatprep.subr.bf16.mxu0 0
        %618 = vmatpush2.bf16.xpose.msra.mxu0 0
        %619 = vmatprep.subr.bf16.mxu0 0
        %620 = vmatpush2.bf16.xpose.msra.mxu0 0
        %621 = vmatprep.subr.bf16.mxu0 0
        %622 = vmatpush2.bf16.xpose.msra.mxu0 0
        %623 = vmatprep.subr.bf16.mxu0 0
        %624 = vmatpush2.bf16.xpose.msra.mxu0 0
        %625 = vmatprep.subr.bf16.mxu0 0
        %626 = vmatpush2.bf16.xpose.msra.mxu0 0
        %627 = vmatprep.subr.bf16.mxu0 0
        %628 = vmatpush2.bf16.xpose.msra.mxu0 0
        %629 = vmatprep.mubr.bf16.mxu0 0
        %630 = vmatmul.mubr.bf16.gmra.mxu0 %v592
        %v631 = vpop.f32.mrf.mxu0
        %v632 = vadd.f32 0.0, %v631
        %v633 = vpop.f32.mrf.mxu0
        %v634 = vpop.f32.mrf.mxu0
        %v635 = vpop.f32.mrf.mxu0
        %636 = vdwg.mxu0
        %v637 = vlaneseq
        %v638 = vshrl.u32 %v637, 7
        %v639 = vlaneseq
        %v640 = vand.u32 %v639, 127
        %vm641 = vcmp.le.s32.totalorder %v640, %v638
        %v642 = vsel %vm641, 1, 0
        %vm643 = vcmp.eq.s32.totalorder %v642, 1
        %v644 = vsel %vm643, %v583, -inf
        %v645 = vsel %vm643, %v632, -inf
        %vm646 = vcmask 64512
        %v647 = vsel %vm646, %v644, -inf
        %648 = vmax.xlane.f32.xlu0 %v647
        %v649 = vpop.xlane.xlu0 %648
        %v650 = vsel %vm646, %v645, -inf
        %651 = vmax.xlane.f32.xlu0 %v650
        %v652 = vpop.xlane.xlu0 %651
        %v653 = vsub.f32 %v644, %v649
        %v654 = vsub.f32 %v645, %v652
        %v655 = vmul.f32 %v653, 1.442695
        %v656 = vpow.pop %v655
        %v657 = vmul.f32 %v654, 1.442695
        %v658 = vpow.pop %v657
        %v659 = vsel %vm646, %v656, 0.0
        %660 = vadd.xlane.f32.xlu0 %v659
        %v661 = vpop.xlane.xlu0 %660
        %v662 = vsel %vm646, %v658, 0.0
        %663 = vadd.xlane.f32.xlu0 %v662
        %v664 = vpop.xlane.xlu0 %663
        %v665 = vpack.c.bf16 %v656, %v656
        %v666 = vpack.c.bf16 %v658, %v658
        %v667 = vpack.c.bf16 %v526, %v526
        %v668 = vpack.c.bf16 %v530, %v530
        %v670 = vsel %vm646, %v665, 0
        %vm672 = vcmask 1043456
        %v674 = vsel %vm672, %v667, 0
        %676 = vmatprep.subr.bf16.mxu0 0
        %677 = vmatpush1.bf16.msra.mxu0 0
        %678 = vmatprep.subr.bf16.mxu0 0
        %679 = vmatpush1.bf16.msra.mxu0 0
        %680 = vmatprep.subr.bf16.mxu0 0
        %681 = vmatpush1.bf16.msra.mxu0 0
        %682 = vmatprep.subr.bf16.mxu0 0
        %683 = vmatpush1.bf16.msra.mxu0 0
        %684 = vmatprep.subr.bf16.mxu0 0
        %685 = vmatpush1.bf16.msra.mxu0 0
        %686 = vmatprep.subr.bf16.mxu0 0
        %687 = vmatpush1.bf16.msra.mxu0 0
        %688 = vmatprep.subr.bf16.mxu0 0
        %689 = vmatpush1.bf16.msra.mxu0 0
        %690 = vmatprep.subr.bf16.mxu0 0
        %691 = vmatpush1.bf16.msra.mxu0 %v674
        %692 = vmatprep.subr.bf16.mxu0 0
        %693 = vmatpush2.bf16.msra.mxu0 0
        %694 = vmatprep.subr.bf16.mxu0 0
        %695 = vmatpush2.bf16.msra.mxu0 0
        %696 = vmatprep.subr.bf16.mxu0 0
        %697 = vmatpush2.bf16.msra.mxu0 0
        %698 = vmatprep.subr.bf16.mxu0 0
        %699 = vmatpush2.bf16.msra.mxu0 0
        %700 = vmatprep.subr.bf16.mxu0 0
        %701 = vmatpush2.bf16.msra.mxu0 0
        %702 = vmatprep.subr.bf16.mxu0 0
        %703 = vmatpush2.bf16.msra.mxu0 0
        %704 = vmatprep.subr.bf16.mxu0 0
        %705 = vmatpush2.bf16.msra.mxu0 0
        %706 = vmatprep.subr.bf16.mxu0 0
        %707 = vmatpush2.bf16.msra.mxu0 0
        %708 = vmatprep.mubr.bf16.mxu0 0
        %709 = vmatmul.mubr.bf16.gmra.mxu0 %v670
        %v710 = vpop.f32.mrf.mxu0
        %v711 = vadd.f32 0.0, %v710
        %v712 = vpop.f32.mrf.mxu0
        %v713 = vpop.f32.mrf.mxu0
        %v714 = vpop.f32.mrf.mxu0
        %715 = vdwg.mxu0
        %v717 = vsel %vm646, %v666, 0
        %v720 = vsel %vm672, %v668, 0
        %722 = vmatprep.subr.bf16.mxu0 0
        %723 = vmatpush1.bf16.msra.mxu0 0
        %724 = vmatprep.subr.bf16.mxu0 0
        %725 = vmatpush1.bf16.msra.mxu0 0
        %726 = vmatprep.subr.bf16.mxu0 0
        %727 = vmatpush1.bf16.msra.mxu0 0
        %728 = vmatprep.subr.bf16.mxu0 0
        %729 = vmatpush1.bf16.msra.mxu0 0
        %730 = vmatprep.subr.bf16.mxu0 0
        %731 = vmatpush1.bf16.msra.mxu0 0
        %732 = vmatprep.subr.bf16.mxu0 0
        %733 = vmatpush1.bf16.msra.mxu0 0
        %734 = vmatprep.subr.bf16.mxu0 0
        %735 = vmatpush1.bf16.msra.mxu0 0
        %736 = vmatprep.subr.bf16.mxu0 0
        %737 = vmatpush1.bf16.msra.mxu0 %v720
        %738 = vmatprep.subr.bf16.mxu0 0
        %739 = vmatpush2.bf16.msra.mxu0 0
        %740 = vmatprep.subr.bf16.mxu0 0
        %741 = vmatpush2.bf16.msra.mxu0 0
        %742 = vmatprep.subr.bf16.mxu0 0
        %743 = vmatpush2.bf16.msra.mxu0 0
        %744 = vmatprep.subr.bf16.mxu0 0
        %745 = vmatpush2.bf16.msra.mxu0 0
        %746 = vmatprep.subr.bf16.mxu0 0
        %747 = vmatpush2.bf16.msra.mxu0 0
        %748 = vmatprep.subr.bf16.mxu0 0
        %749 = vmatpush2.bf16.msra.mxu0 0
        %750 = vmatprep.subr.bf16.mxu0 0
        %751 = vmatpush2.bf16.msra.mxu0 0
        %752 = vmatprep.subr.bf16.mxu0 0
        %753 = vmatpush2.bf16.msra.mxu0 0
        %754 = vmatprep.mubr.bf16.mxu0 0
        %755 = vmatmul.mubr.bf16.gmra.mxu0 %v717
        %v756 = vpop.f32.mrf.mxu0
        %v757 = vadd.f32 0.0, %v756
        %v758 = vpop.f32.mrf.mxu0
        %v759 = vpop.f32.mrf.mxu0
        %v760 = vpop.f32.mrf.mxu0
        %761 = vdwg.mxu0
        %v762 = vrcp.pop %v661
        %v763 = vrcp.pop %v664
        %v764 = vmul.f32 %v711, %v762
        %v765 = vmul.f32 %v757, %v763
        %766 = vst.msk [vmem:[%s139] sm:$0xff] %vm541, %v764
        %767 = vst.msk [vmem:[%s139 + $0x8] sm:$0xff] %vm541, %v765
        %s768 = sand.u32 %s71, 1
        %s769 = scalar_lea.sflag [#allocation3], %s768
        %s770 = sand.u32 %s71, 1
        %s771 = smul.addr %s770, 16
        %s772 = scalar_lea.vmem [#allocation2], %s771
        // Predicated region
        $region29: #{tpu_custom_call.1} parent=27 // pred_check
          %p773 = pneg %p81
        $region30: #{tpu_custom_call.1} parent=27 // pred_check_branch
          %775 = sbr.rel (%p773) target = $region32
        $region31: #{tpu_custom_call.1} parent=27 // pred_region
          %s776 = smul.u32 2, %s16
          %s778 = ssub.s32 256, 256
          %779 = vsyncadd %s769, %s778
          %s780 = smul.addr %s776, 128
          %s781 = scalar_lea.hbm %s2, %s780
          %s782 = sshll.u32 %s772, 4
          %s783 = int_to_ptr.vmem [resolvable:$true] %s782
          %788 = dma.vmem_to_hbm [thread:$0]  %s783, 256, %s781, %s769, 128, 128, 8
        $region32: #{tpu_custom_call.1} parent=27 // pred_fallthru
          _
      $region28: #{tpu_custom_call.1} parent=5 // pred_fallthru
        _
      %p789 = scmp.le.s32.totalorder 2, %s11
      // Predicated region
      $region33: #{tpu_custom_call.1} parent=5 // pred_check
        %p790 = pneg %p789
      $region34: #{tpu_custom_call.1} parent=5 // pred_check_branch
        %792 = sbr.rel (%p790) target = $region36
      $region35: #{tpu_custom_call.1} parent=5 // pred_region
        %s793 = ssub.s32 %s11, 2
        // Predicated region
        $region37: #{tpu_custom_call.1} parent=35 // pred_check
          %p794 = pneg %p87
        $region38: #{tpu_custom_call.1} parent=35 // pred_check_branch
          %796 = sbr.rel (%p794) target = $region40
        $region39: #{tpu_custom_call.1} parent=35 // pred_region
          %s797 = sand.u32 %s72, 1
          %s798 = scalar_lea.sflag [#allocation3], %s797
          %s799 = sand.u32 %s72, 1
          %s800 = smul.addr %s799, 16
          %s801 = scalar_lea.vmem [#allocation2], %s800
          %802 = dma.done %s798, 256
        $region40: #{tpu_custom_call.1} parent=35 // pred_fallthru
          _
      $region36: #{tpu_custom_call.1} parent=5 // pred_fallthru
        _
    $region6: #{tpu_custom_call.1} parent=1 // loop_footer
      %s15 = sadd.s32 1, %s11
    $region7: #{tpu_custom_call.1} parent=1 // loop_footer_branch
      %10 = sbr.rel target = $region3
    $region8: #{tpu_custom_call.1} parent=1 // loop_exit
      _
    %803 = vsyncpa [#allocation3], 1
    %s804 = scalar_lea.sflag [#allocation3], 1
    %805 = vsyncpa %s804, 1

</llo_original>
